<compile_context>
chip_gen: v5e
topology: v5e:2x2
jax: 0.10.0
libtpu: 0.0.40
codegen_flags: <defaults>
</compile_context>

<pallas_src>
import functools

import jax
import jax.numpy as jnp
import numpy as np
from jax.experimental import pallas as pl
from jax.experimental.pallas import tpu as pltpu


def _bn_act_conv_kernel(x_ref, scale_ref, bias_ref, w_ref, o_ref,
                        *, width, padding, kh_sz, kw_sz):
    """Per grid step (one image):
       x_ref:     (C, H*W)      f32   activation, spatial packed into lanes
       scale_ref: (C, 1)        f32   folded BN scale
       bias_ref:  (C, 1)        f32   folded BN bias
       w_ref:     (OC_pad, K)   bf16  im2col-ordered weights, K = KH*KW*C
       o_ref:     (OC_pad, L)   f32   L = Hc*W (stride-1 output, row stride = W)
    """
    c, hw = x_ref.shape
    out_lanes = o_ref.shape[-1]

    # ---- BatchNorm (inference, pre-folded) + ReLU: f32 on the VPU, lane dense ----
    act = jnp.maximum(x_ref[...] * scale_ref[...] + bias_ref[...], 0.0)      # (C, HW)

    # ---- Zero-extend the flat activation so every tap is a static lane slice ----
    pad_l = padding * (width + 1)
    pad_r = padding * width + kw_sz
    parts = []
    if pad_l:
        parts.append(jnp.zeros((c, pad_l), jnp.float32))
    parts.append(act)
    parts.append(jnp.zeros((c, pad_r), jnp.float32))
    act_ext = jnp.concatenate(parts, axis=1)             # (C, pad_l + HW + pad_r)

    # Column index of each output lane (output row stride = input width).
    col = jax.lax.broadcasted_iota(jnp.int32, (c, out_lanes), 1) % width

    # ---- Transposed im2col, built as values: tap t occupies rows [t*C, (t+1)*C) ----
    taps = []
    for t in range(kh_sz * kw_sz):
        kh = t // kw_sz
        kw = t % kw_sz
        off = pad_l + (kh - padding) * width + (kw - padding)
        tap = act_ext[:, off:off + out_lanes]             # (C, L) lane-shifted read
        dkw = kw - padding
        if dkw != 0:                                      # mask columns that wrapped rows
            valid = (col + dkw >= 0) & (col + dkw < width)
            tap = jnp.where(valid, tap, 0.0)
        taps.append(tap)
    patches_t = jnp.concatenate(taps, axis=0).astype(jnp.bfloat16)   # (K, L) bf16

    # ---- Single MXU matmul, f32 accumulation, lane-dense (OC_pad, L) output ----
    o_ref[...] = jnp.dot(w_ref[...], patches_t, preferred_element_type=jnp.float32)


def bn_act_conv2d(x_nchw, gamma, beta, run_mean, run_var, weight_oihw,
                  *, stride=1, padding=0, eps=1e-3):
    """PyTorch-semantics forward of BnActConv2d (groups=1, bias=False). NCHW in/out."""
    n, c, h, w = x_nchw.shape
    oc, c_in, kh, kw = weight_oihw.shape
    assert c_in == c, "groups != 1 not supported"     # TODO(synk): grouped conv
    assert 2 * padding <= kw - 1, "2*padding > kernel_w-1 unsupported by packed-lane layout"

    hc = h + 2 * padding - kh + 1          # stride-1 output height
    wc = w + 2 * padding - kw + 1          # stride-1 output width
    assert hc >= 1 and wc >= 1
    oh = (h + 2 * padding - kh) // stride + 1
    ow = (w + 2 * padding - kw) // stride + 1

    hw = h * w
    out_lanes = hc * w                     # output lanes per image (row stride = w)
    k = kh * kw * c
    oc_pad = ((oc + 7) // 8) * 8           # sublane-align output channels (no 128-padding!)

    # ---- Glue (plain JAX): flatten spatial into lanes (no transpose), fold BN, pack W ----
    x_flat = x_nchw.reshape(n, c, hw).astype(jnp.float32)
    scale = (gamma / jnp.sqrt(run_var + eps)).astype(jnp.float32)
    bias = (beta - run_mean * scale).astype(jnp.float32)
    scale2 = scale.reshape(c, 1)
    bias2 = bias.reshape(c, 1)
    # OIHW -> (OC, KH, KW, C) -> (OC, KH*KW*C); pad OC to /8; bf16 MXU operand.
    w_t = jnp.transpose(weight_oihw, (0, 2, 3, 1)).reshape(oc, k)
    w_t = jnp.pad(w_t, ((0, oc_pad - oc), (0, 0))).astype(jnp.bfloat16)

    kernel = functools.partial(_bn_act_conv_kernel,
                               width=w, padding=padding, kh_sz=kh, kw_sz=kw)

    out = pl.pallas_call(
        kernel,
        out_shape=jax.ShapeDtypeStruct((n, oc_pad, out_lanes), jnp.float32),
        grid_spec=pltpu.PrefetchScalarGridSpec(
            num_scalar_prefetch=0,
            grid=(n,),                                    # batch only; v7x splits across 2 TCs
            in_specs=[
                pl.BlockSpec((None, c, hw), lambda b: (b, 0, 0)),      # x (one image)
                pl.BlockSpec((c, 1), lambda b: (0, 0)),                # BN scale
                pl.BlockSpec((c, 1), lambda b: (0, 0)),                # BN bias
                pl.BlockSpec((oc_pad, k), lambda b: (0, 0)),           # packed weights
            ],
            out_specs=pl.BlockSpec((None, oc_pad, out_lanes), lambda b: (b, 0, 0)),
        ),
        compiler_params=pltpu.CompilerParams(dimension_semantics=("parallel",)),
    )(x_flat, scale2, bias2, w_t)

    # (N, OC_pad, Hc*W) is already channel-major: drop OC padding / junk columns,
    # reshape to NCHW, and apply the conv stride by subsampling the stride-1 result.
    out = out[:, :oc, :].reshape(n, oc, hc, w)[:, :, :, :wc]
    if stride > 1:
        out = out[:, :, ::stride, ::stride]
    return out


def _reference(x_nchw, gamma, beta, run_mean, run_var, weight_oihw,
               *, stride, padding, eps):
    scale = gamma / jnp.sqrt(run_var + eps)
    bias = beta - run_mean * scale
    a = jnp.maximum(x_nchw * scale[None, :, None, None] + bias[None, :, None, None], 0.0)
    # Match the kernel's bf16 MXU operands (operands rounded to bf16, f32 accumulation).
    a = a.astype(jnp.bfloat16).astype(jnp.float32)
    wq = weight_oihw.astype(jnp.bfloat16).astype(jnp.float32)
    return jax.lax.conv_general_dilated(
        a, wq,
        window_strides=(stride, stride),
        padding=[(padding, padding), (padding, padding)],
        dimension_numbers=('NCHW', 'OIHW', 'NCHW'),
        preferred_element_type=jnp.float32,
        precision=jax.lax.Precision.HIGHEST)


if __name__ == "__main__":
    # BnActConv2d(in_chs=8, out_chs=16, kernel_size=3, stride=1, padding=1),
    # input x of shape (2, 8, 16, 16) NCHW.
    N, C_IN, H, W = 2, 8, 16, 16
    C_OUT, K, STRIDE, PAD = 16, 3, 1, 1
    EPS = 1e-3

    key = jax.random.PRNGKey(0)
    kx, kw_, kg, kb, km, kv = jax.random.split(key, 6)

    x = jax.random.normal(kx, (N, C_IN, H, W), dtype=jnp.float32)
    weight = jax.random.normal(kw_, (C_OUT, C_IN, K, K), dtype=jnp.float32) * 0.1
    gamma = 1.0 + 0.1 * jax.random.normal(kg, (C_IN,), dtype=jnp.float32)
    beta = 0.1 * jax.random.normal(kb, (C_IN,), dtype=jnp.float32)
    run_mean = 0.1 * jax.random.normal(km, (C_IN,), dtype=jnp.float32)
    run_var = jnp.abs(jax.random.normal(kv, (C_IN,), dtype=jnp.float32)) + 0.5

    out = bn_act_conv2d(x, gamma, beta, run_mean, run_var, weight,
                        stride=STRIDE, padding=PAD, eps=EPS)
    out = jax.block_until_ready(out)

    ref = _reference(x, gamma, beta, run_mean, run_var, weight,
                     stride=STRIDE, padding=PAD, eps=EPS)
    ref = jax.block_until_ready(ref)

    np.testing.assert_allclose(np.asarray(out), np.asarray(ref), rtol=1e-3, atol=1e-3)
    assert out.shape == (N, C_OUT, H, W)
    print("KERNEL_OK")
</pallas_src>

<mosaic_0001>
module attributes {stable_mosaic.version = 11 : i64} {
  func.func @_bn_act_conv_kernel(%arg0: i32, %arg1: memref<1x8x256xf32, #tpu.memory_space<vmem>>, %arg2: memref<8x1xf32, #tpu.memory_space<vmem>>, %arg3: memref<8x1xf32, #tpu.memory_space<vmem>>, %arg4: memref<16x72xbf16, #tpu.memory_space<vmem>>, %arg5: memref<1x16x256xf32, #tpu.memory_space<vmem>>) attributes {dimension_semantics = [#tpu.dimension_semantics<parallel>], iteration_bounds = array<i64: 2>, scalar_prefetch = 0 : i64, scratch_operands = 0 : i64, tpu.core_type = #tpu.core_type<tc>, window_params = [{transform_indices = @transform_0, window_bounds = array<i64: 1, 8, 256>}, {pipeline_mode = #tpu.pipeline_mode<synchronous>, transform_indices = @transform_1, window_bounds = array<i64: 8, 1>}, {pipeline_mode = #tpu.pipeline_mode<synchronous>, transform_indices = @transform_2, window_bounds = array<i64: 8, 1>}, {pipeline_mode = #tpu.pipeline_mode<synchronous>, transform_indices = @transform_3, window_bounds = array<i64: 16, 72>}, {transform_indices = @transform_4, window_bounds = array<i64: 1, 16, 256>}]} {
    %c0 = arith.constant 0 : index
    %c0_0 = arith.constant 0 : index
    %c0_1 = arith.constant 0 : index
    %0 = vector.load %arg1[%c0, %c0_0, %c0_1] : memref<1x8x256xf32, #tpu.memory_space<vmem>>, vector<1x8x256xf32>
    %1 = vector.shape_cast %0 : vector<1x8x256xf32> to vector<8x256xf32>
    %c0_2 = arith.constant 0 : index
    %c0_3 = arith.constant 0 : index
    %2 = vector.load %arg2[%c0_2, %c0_3] : memref<8x1xf32, #tpu.memory_space<vmem>>, vector<8x1xf32>
    %3 = vector.broadcast %2 : vector<8x1xf32> to vector<8x256xf32>
    %4 = arith.mulf %1, %3 : vector<8x256xf32>
    %c0_4 = arith.constant 0 : index
    %c0_5 = arith.constant 0 : index
    %5 = vector.load %arg3[%c0_4, %c0_5] : memref<8x1xf32, #tpu.memory_space<vmem>>, vector<8x1xf32>
    %6 = vector.broadcast %5 : vector<8x1xf32> to vector<8x256xf32>
    %7 = arith.addf %4, %6 : vector<8x256xf32>
    %cst = arith.constant 0.000000e+00 : f32
    %8 = vector.broadcast %cst : f32 to vector<8x256xf32>
    %9 = arith.maximumf %7, %8 : vector<8x256xf32>
    %cst_6 = arith.constant 0.000000e+00 : f32
    %10 = vector.broadcast %cst_6 : f32 to vector<8x17xf32>
    %cst_7 = arith.constant 0.000000e+00 : f32
    %11 = vector.broadcast %cst_7 : f32 to vector<8x19xf32>
    %12 = tpu.concatenate %10, %9, %11 in 1 : vector<8x17xf32>, vector<8x256xf32>, vector<8x19xf32> -> vector<8x292xf32>
    %13 = tpu.iota {dimensions = array<i32: 1>} : vector<8x256xi32>
    %c16_i32 = arith.constant 16 : i32
    %c0_i32 = arith.constant 0 : i32
    %14 = arith.cmpi eq, %c16_i32, %c0_i32 : i32
    %c1_i32 = arith.constant 1 : i32
    %15 = arith.select %14, %c1_i32, %c16_i32 : i32
    %16 = vector.broadcast %15 : i32 to vector<8x256xi32>
    %17 = arith.remsi %13, %16 : vector<8x256xi32>
    %c0_i32_8 = arith.constant 0 : i32
    %18 = vector.broadcast %c0_i32_8 : i32 to vector<8x256xi32>
    %19 = arith.cmpi ne, %17, %18 : vector<8x256xi32>
    %c0_i32_9 = arith.constant 0 : i32
    %20 = vector.broadcast %c0_i32_9 : i32 to vector<8x256xi32>
    %21 = arith.cmpi slt, %17, %20 : vector<8x256xi32>
    %c0_i32_10 = arith.constant 0 : i32
    %22 = arith.cmpi slt, %15, %c0_i32_10 : i32
    %23 = vector.broadcast %22 : i1 to vector<8x256xi1>
    %24 = vector.broadcast %23 : vector<8x256xi1> to vector<8x256xi1>
    %25 = arith.xori %21, %24 : vector<8x256xi1>
    %26 = arith.andi %25, %19 : vector<8x256xi1>
    %27 = vector.broadcast %15 : i32 to vector<8x256xi32>
    %28 = arith.addi %17, %27 : vector<8x256xi32>
    %29 = arith.select %26, %28, %17 : vector<8x256xi1>, vector<8x256xi32>
    %30 = vector.extract_strided_slice %12 {offsets = [0, 0], sizes = [8, 256], strides = [1, 1]} : vector<8x292xf32> to vector<8x256xf32>
    %c-1_i32 = arith.constant -1 : i32
    %31 = vector.broadcast %c-1_i32 : i32 to vector<8x256xi32>
    %32 = arith.addi %29, %31 : vector<8x256xi32>
    %c0_i32_11 = arith.constant 0 : i32
    %33 = vector.broadcast %c0_i32_11 : i32 to vector<8x256xi32>
    %34 = arith.cmpi sge, %32, %33 : vector<8x256xi32>
    %c-1_i32_12 = arith.constant -1 : i32
    %35 = vector.broadcast %c-1_i32_12 : i32 to vector<8x256xi32>
    %36 = arith.addi %29, %35 : vector<8x256xi32>
    %c16_i32_13 = arith.constant 16 : i32
    %37 = vector.broadcast %c16_i32_13 : i32 to vector<8x256xi32>
    %38 = arith.cmpi slt, %36, %37 : vector<8x256xi32>
    %39 = arith.andi %34, %38 : vector<8x256xi1>
    %cst_14 = arith.constant 0.000000e+00 : f32
    %40 = vector.broadcast %cst_14 : f32 to vector<8x256xf32>
    %41 = arith.select %39, %30, %40 : vector<8x256xi1>, vector<8x256xf32>
    %42 = vector.extract_strided_slice %12 {offsets = [0, 1], sizes = [8, 256], strides = [1, 1]} : vector<8x292xf32> to vector<8x256xf32>
    %43 = vector.extract_strided_slice %12 {offsets = [0, 2], sizes = [8, 256], strides = [1, 1]} : vector<8x292xf32> to vector<8x256xf32>
    %c1_i32_15 = arith.constant 1 : i32
    %44 = vector.broadcast %c1_i32_15 : i32 to vector<8x256xi32>
    %45 = arith.addi %29, %44 : vector<8x256xi32>
    %c0_i32_16 = arith.constant 0 : i32
    %46 = vector.broadcast %c0_i32_16 : i32 to vector<8x256xi32>
    %47 = arith.cmpi sge, %45, %46 : vector<8x256xi32>
    %c1_i32_17 = arith.constant 1 : i32
    %48 = vector.broadcast %c1_i32_17 : i32 to vector<8x256xi32>
    %49 = arith.addi %29, %48 : vector<8x256xi32>
    %c16_i32_18 = arith.constant 16 : i32
    %50 = vector.broadcast %c16_i32_18 : i32 to vector<8x256xi32>
    %51 = arith.cmpi slt, %49, %50 : vector<8x256xi32>
    %52 = arith.andi %47, %51 : vector<8x256xi1>
    %cst_19 = arith.constant 0.000000e+00 : f32
    %53 = vector.broadcast %cst_19 : f32 to vector<8x256xf32>
    %54 = arith.select %52, %43, %53 : vector<8x256xi1>, vector<8x256xf32>
    %55 = vector.extract_strided_slice %12 {offsets = [0, 16], sizes = [8, 256], strides = [1, 1]} : vector<8x292xf32> to vector<8x256xf32>
    %c-1_i32_20 = arith.constant -1 : i32
    %56 = vector.broadcast %c-1_i32_20 : i32 to vector<8x256xi32>
    %57 = arith.addi %29, %56 : vector<8x256xi32>
    %c0_i32_21 = arith.constant 0 : i32
    %58 = vector.broadcast %c0_i32_21 : i32 to vector<8x256xi32>
    %59 = arith.cmpi sge, %57, %58 : vector<8x256xi32>
    %c-1_i32_22 = arith.constant -1 : i32
    %60 = vector.broadcast %c-1_i32_22 : i32 to vector<8x256xi32>
    %61 = arith.addi %29, %60 : vector<8x256xi32>
    %c16_i32_23 = arith.constant 16 : i32
    %62 = vector.broadcast %c16_i32_23 : i32 to vector<8x256xi32>
    %63 = arith.cmpi slt, %61, %62 : vector<8x256xi32>
    %64 = arith.andi %59, %63 : vector<8x256xi1>
    %cst_24 = arith.constant 0.000000e+00 : f32
    %65 = vector.broadcast %cst_24 : f32 to vector<8x256xf32>
    %66 = arith.select %64, %55, %65 : vector<8x256xi1>, vector<8x256xf32>
    %67 = vector.extract_strided_slice %12 {offsets = [0, 17], sizes = [8, 256], strides = [1, 1]} : vector<8x292xf32> to vector<8x256xf32>
    %68 = vector.extract_strided_slice %12 {offsets = [0, 18], sizes = [8, 256], strides = [1, 1]} : vector<8x292xf32> to vector<8x256xf32>
    %c1_i32_25 = arith.constant 1 : i32
    %69 = vector.broadcast %c1_i32_25 : i32 to vector<8x256xi32>
    %70 = arith.addi %29, %69 : vector<8x256xi32>
    %c0_i32_26 = arith.constant 0 : i32
    %71 = vector.broadcast %c0_i32_26 : i32 to vector<8x256xi32>
    %72 = arith.cmpi sge, %70, %71 : vector<8x256xi32>
    %c1_i32_27 = arith.constant 1 : i32
    %73 = vector.broadcast %c1_i32_27 : i32 to vector<8x256xi32>
    %74 = arith.addi %29, %73 : vector<8x256xi32>
    %c16_i32_28 = arith.constant 16 : i32
    %75 = vector.broadcast %c16_i32_28 : i32 to vector<8x256xi32>
    %76 = arith.cmpi slt, %74, %75 : vector<8x256xi32>
    %77 = arith.andi %72, %76 : vector<8x256xi1>
    %cst_29 = arith.constant 0.000000e+00 : f32
    %78 = vector.broadcast %cst_29 : f32 to vector<8x256xf32>
    %79 = arith.select %77, %68, %78 : vector<8x256xi1>, vector<8x256xf32>
    %80 = vector.extract_strided_slice %12 {offsets = [0, 32], sizes = [8, 256], strides = [1, 1]} : vector<8x292xf32> to vector<8x256xf32>
    %c-1_i32_30 = arith.constant -1 : i32
    %81 = vector.broadcast %c-1_i32_30 : i32 to vector<8x256xi32>
    %82 = arith.addi %29, %81 : vector<8x256xi32>
    %c0_i32_31 = arith.constant 0 : i32
    %83 = vector.broadcast %c0_i32_31 : i32 to vector<8x256xi32>
    %84 = arith.cmpi sge, %82, %83 : vector<8x256xi32>
    %c-1_i32_32 = arith.constant -1 : i32
    %85 = vector.broadcast %c-1_i32_32 : i32 to vector<8x256xi32>
    %86 = arith.addi %29, %85 : vector<8x256xi32>
    %c16_i32_33 = arith.constant 16 : i32
    %87 = vector.broadcast %c16_i32_33 : i32 to vector<8x256xi32>
    %88 = arith.cmpi slt, %86, %87 : vector<8x256xi32>
    %89 = arith.andi %84, %88 : vector<8x256xi1>
    %cst_34 = arith.constant 0.000000e+00 : f32
    %90 = vector.broadcast %cst_34 : f32 to vector<8x256xf32>
    %91 = arith.select %89, %80, %90 : vector<8x256xi1>, vector<8x256xf32>
    %92 = vector.extract_strided_slice %12 {offsets = [0, 33], sizes = [8, 256], strides = [1, 1]} : vector<8x292xf32> to vector<8x256xf32>
    %93 = vector.extract_strided_slice %12 {offsets = [0, 34], sizes = [8, 256], strides = [1, 1]} : vector<8x292xf32> to vector<8x256xf32>
    %c1_i32_35 = arith.constant 1 : i32
    %94 = vector.broadcast %c1_i32_35 : i32 to vector<8x256xi32>
    %95 = arith.addi %29, %94 : vector<8x256xi32>
    %c0_i32_36 = arith.constant 0 : i32
    %96 = vector.broadcast %c0_i32_36 : i32 to vector<8x256xi32>
    %97 = arith.cmpi sge, %95, %96 : vector<8x256xi32>
    %c1_i32_37 = arith.constant 1 : i32
    %98 = vector.broadcast %c1_i32_37 : i32 to vector<8x256xi32>
    %99 = arith.addi %29, %98 : vector<8x256xi32>
    %c16_i32_38 = arith.constant 16 : i32
    %100 = vector.broadcast %c16_i32_38 : i32 to vector<8x256xi32>
    %101 = arith.cmpi slt, %99, %100 : vector<8x256xi32>
    %102 = arith.andi %97, %101 : vector<8x256xi1>
    %cst_39 = arith.constant 0.000000e+00 : f32
    %103 = vector.broadcast %cst_39 : f32 to vector<8x256xf32>
    %104 = arith.select %102, %93, %103 : vector<8x256xi1>, vector<8x256xf32>
    %105 = tpu.concatenate %41, %42, %54, %66, %67, %79, %91, %92, %104 in 0 : vector<8x256xf32>, vector<8x256xf32>, vector<8x256xf32>, vector<8x256xf32>, vector<8x256xf32>, vector<8x256xf32>, vector<8x256xf32>, vector<8x256xf32>, vector<8x256xf32> -> vector<72x256xf32>
    %106 = arith.truncf %105 : vector<72x256xf32> to vector<72x256xbf16>
    %c0_40 = arith.constant 0 : index
    %c0_41 = arith.constant 0 : index
    %107 = vector.load %arg4[%c0_40, %c0_41] : memref<16x72xbf16, #tpu.memory_space<vmem>>, vector<16x72xbf16>
    %cst_42 = arith.constant dense<0.000000e+00> : vector<16x256xf32>
    %108 = tpu.matmul %107, %106, %cst_42 {dimension_numbers = #tpu.dot_dimension_numbers<[1], [0], [0], [1], [0, 0, 1, 1], [], []>} : vector<16x72xbf16>, vector<72x256xbf16>, vector<16x256xf32> -> vector<16x256xf32>
    %c0_43 = arith.constant 0 : index
    %c0_44 = arith.constant 0 : index
    %c0_45 = arith.constant 0 : index
    %109 = vector.load %arg5[%c0_43, %c0_44, %c0_45] : memref<1x16x256xf32, #tpu.memory_space<vmem>>, vector<1x16x256xf32>
    %110 = vector.shape_cast %109 : vector<1x16x256xf32> to vector<16x256xf32>
    %111 = vector.shape_cast %108 : vector<16x256xf32> to vector<1x16x256xf32>
    tpu.vector_store %arg5[%c0_43, %c0_44, %c0_45], %111 {strides = array<i32>} : memref<1x16x256xf32, #tpu.memory_space<vmem>>, vector<1x16x256xf32>,
    return
  }
  func.func @transform_0(%arg0: i32) -> (i32, i32, i32) {
    %c0_i32 = arith.constant 0 : i32
    %c0_i32_0 = arith.constant 0 : i32
    %c0_i32_1 = arith.constant 0 : i32
    return %arg0, %c0_i32, %c0_i32_0 : i32, i32, i32
  }
  func.func @transform_1(%arg0: i32) -> (i32, i32) {
    %c0_i32 = arith.constant 0 : i32
    %c0_i32_0 = arith.constant 0 : i32
    %c0_i32_1 = arith.constant 0 : i32
    return %c0_i32, %c0_i32_0 : i32, i32
  }
  func.func @transform_2(%arg0: i32) -> (i32, i32) {
    %c0_i32 = arith.constant 0 : i32
    %c0_i32_0 = arith.constant 0 : i32
    %c0_i32_1 = arith.constant 0 : i32
    return %c0_i32, %c0_i32_0 : i32, i32
  }
  func.func @transform_3(%arg0: i32) -> (i32, i32) {
    %c0_i32 = arith.constant 0 : i32
    %c0_i32_0 = arith.constant 0 : i32
    %c0_i32_1 = arith.constant 0 : i32
    return %c0_i32, %c0_i32_0 : i32, i32
  }
  func.func @transform_4(%arg0: i32) -> (i32, i32, i32) {
    %c0_i32 = arith.constant 0 : i32
    %c0_i32_0 = arith.constant 0 : i32
    %c0_i32_1 = arith.constant 0 : i32
    return %arg0, %c0_i32, %c0_i32_0 : i32, i32, i32
  }
}

</mosaic_0001>

<llo_original>
// kernel: tpu_custom_call.1
$region0: #{tpu_custom_call.1}
  #allocation0 [shape = 'u32[]', space=smem, size = 0x4, offset = 0x4, fixed_abs, tag = 'smem constant byte address 0x4 - core index']
  #allocation1 [shape = 'u32[72,128]{1,0:T(1,128)}', space=vmem, size = 0x9000, scoped, tag = 'internal scratch']
  %s0 = inlined_call_operand.hbm [shape: f32[2,8,256], index: 0, kind: input, shape index: {}]
  %s1 = inlined_call_operand.vmem [shape: f32[8,1], index: 1, kind: input, shape index: {}]
  %s2 = inlined_call_operand.vmem [shape: f32[8,1], index: 2, kind: input, shape index: {}]
  %s3 = inlined_call_operand.vmem [shape: bf16[16,72], index: 3, kind: input, shape index: {}]
  %s4 = inlined_call_operand.hbm [shape: f32[2,16,256], index: 4, kind: output, shape index: {}]
  %s5 = sld [smem:[#allocation0]]
  $region53: #{tpu_custom_call.1} parent=0
    _
  %s7 = ssub.s32 1, %s5
  %s8 = scalar_select 0, %s7, %s5
  $region1: #{tpu_custom_call.1} parent=0
    #allocation2 [shape = 'u8[16384]{0}', space=vmem, size = 0x4000, scoped, tag = 'input window, operand 0']
    #allocation3 [shape = 's32[2]{0}', space=sflag, size = 0x8, scoped, tag = 'scoped memory for tpu_custom_call.1']
    #allocation4 [shape = 's32[2]{0}', space=sflag, size = 0x8, scoped, tag = 'scoped memory for tpu_custom_call.1']
    #allocation5 [shape = 'u8[32768]{0}', space=vmem, size = 0x8000, scoped, tag = 'output window, operand 0']
    %9 = vsyncpa [#allocation3], 0
    %s10 = scalar_lea.sflag [#allocation3], 1
    %11 = vsyncpa %s10, 0
    %12 = vsyncpa [#allocation4], 0
    %s13 = scalar_lea.sflag [#allocation4], 1
    %14 = vsyncpa %s13, 0
    loop: start=0, step=1, limit=4
    $region2: #{tpu_custom_call.1} parent=1 // loop_pre_header
      _
    $region3: #{tpu_custom_call.1} parent=1 // loop_header
      %s16 = sphi 0, %s20
      %p17 = scmp.ge.s32.totalorder %s16, 4
      %s26 = sphi 0, %s28
      %s29 = sphi 0, %s26
      %s30 = sphi 0, %s29
      %s46 = sphi 0, %s30
      %s50 = sphi 0, %s50
      %s52 = sphi 0, %s50
      %s53 = sphi 0, %s52
      %s67 = sphi 0, %s53
      %s71 = sphi 0, %s71
      %s73 = sphi 0, %s71
      %s74 = sphi 0, %s73
      %s88 = sphi 0, %s74
      %s92 = sphi 0, %s92
      %s94 = sphi 0, %s92
      %s95 = sphi 0, %s94
      %s109 = sphi 0, %s95
      %s115 = sphi 0, %s117
      %s118 = sphi 0, %s115
      %s119 = sphi 0, %s118
      %s135 = sphi 0, %s119
    $region4: #{tpu_custom_call.1} parent=1 // loop_header_branch
      %19 = sbr.rel (%p17) target = $region8
    $region5: #{tpu_custom_call.1} parent=1 // loop_body
      %s21 = ssub.s32 %s16, 1
      %s22 = ssub.s32 %s16, 2
      %s23 = sadd.s32 %s16, 1
      %s24 = ssub.s32 %s16, %s23
      %p25 = scmp.eq.s32.totalorder %s24, 0
      %s27 = sadd.s32 %s26, 1
      %s28 = scalar_select %p25, %s26, %s27
      %p31 = pneg %p25
      %p32 = scmp.eq.s32.totalorder %s16, 1
      %p33 = por %p31, %p32
      %p34 = scmp.ne.s32.totalorder %s26, %s29
      %p35 = scmp.eq.s32.totalorder %s16, 0
      %p36 = por %p34, %p35
      %p37 = scmp.ne.s32.totalorder %s26, %s29
      %p38 = scmp.eq.s32.totalorder %s21, 1
      %p39 = por %p37, %p38
      %p40 = scmp.ne.s32.totalorder %s29, %s30
      %p41 = scmp.eq.s32.totalorder %s21, 0
      %p42 = por %p40, %p41
      %p43 = scmp.ne.s32.totalorder %s29, %s30
      %p44 = scmp.eq.s32.totalorder %s22, 1
      %p45 = por %p43, %p44
      %p47 = scmp.ne.s32.totalorder %s30, %s46
      %p48 = scmp.eq.s32.totalorder %s22, 0
      %p49 = por %p47, %p48
      %s51 = sadd.s32 %s50, 1
      %p54 = scmp.eq.s32.totalorder %s16, 1
      %p55 = scmp.ne.s32.totalorder %s50, %s52
      %p56 = scmp.eq.s32.totalorder %s16, 0
      %p57 = por %p55, %p56
      %p58 = scmp.ne.s32.totalorder %s50, %s52
      %p59 = scmp.eq.s32.totalorder %s21, 1
      %p60 = por %p58, %p59
      %p61 = scmp.ne.s32.totalorder %s52, %s53
      %p62 = scmp.eq.s32.totalorder %s21, 0
      %p63 = por %p61, %p62
      %p64 = scmp.ne.s32.totalorder %s52, %s53
      %p65 = scmp.eq.s32.totalorder %s22, 1
      %p66 = por %p64, %p65
      %p68 = scmp.ne.s32.totalorder %s53, %s67
      %p69 = scmp.eq.s32.totalorder %s22, 0
      %p70 = por %p68, %p69
      %s72 = sadd.s32 %s71, 1
      %p75 = scmp.eq.s32.totalorder %s16, 1
      %p76 = scmp.ne.s32.totalorder %s71, %s73
      %p77 = scmp.eq.s32.totalorder %s16, 0
      %p78 = por %p76, %p77
      %p79 = scmp.ne.s32.totalorder %s71, %s73
      %p80 = scmp.eq.s32.totalorder %s21, 1
      %p81 = por %p79, %p80
      %p82 = scmp.ne.s32.totalorder %s73, %s74
      %p83 = scmp.eq.s32.totalorder %s21, 0
      %p84 = por %p82, %p83
      %p85 = scmp.ne.s32.totalorder %s73, %s74
      %p86 = scmp.eq.s32.totalorder %s22, 1
      %p87 = por %p85, %p86
      %p89 = scmp.ne.s32.totalorder %s74, %s88
      %p90 = scmp.eq.s32.totalorder %s22, 0
      %p91 = por %p89, %p90
      %s93 = sadd.s32 %s92, 1
      %p96 = scmp.eq.s32.totalorder %s16, 1
      %p97 = scmp.ne.s32.totalorder %s92, %s94
      %p98 = scmp.eq.s32.totalorder %s16, 0
      %p99 = por %p97, %p98
      %p100 = scmp.ne.s32.totalorder %s92, %s94
      %p101 = scmp.eq.s32.totalorder %s21, 1
      %p102 = por %p100, %p101
      %p103 = scmp.ne.s32.totalorder %s94, %s95
      %p104 = scmp.eq.s32.totalorder %s21, 0
      %p105 = por %p103, %p104
      %p106 = scmp.ne.s32.totalorder %s94, %s95
      %p107 = scmp.eq.s32.totalorder %s22, 1
      %p108 = por %p106, %p107
      %p110 = scmp.ne.s32.totalorder %s95, %s109
      %p111 = scmp.eq.s32.totalorder %s22, 0
      %p112 = por %p110, %p111
      %s113 = ssub.s32 %s16, %s23
      %p114 = scmp.eq.s32.totalorder %s113, 0
      %s116 = sadd.s32 %s115, 1
      %s117 = scalar_select %p114, %s115, %s116
      %p120 = pneg %p114
      %p121 = scmp.eq.s32.totalorder %s16, 1
      %p122 = por %p120, %p121
      %p123 = scmp.ne.s32.totalorder %s115, %s118
      %p124 = scmp.eq.s32.totalorder %s16, 0
      %p125 = por %p123, %p124
      %p126 = scmp.ne.s32.totalorder %s115, %s118
      %p127 = scmp.eq.s32.totalorder %s21, 1
      %p128 = por %p126, %p127
      %p129 = scmp.ne.s32.totalorder %s118, %s119
      %p130 = scmp.eq.s32.totalorder %s21, 0
      %p131 = por %p129, %p130
      %p132 = scmp.ne.s32.totalorder %s118, %s119
      %p133 = scmp.eq.s32.totalorder %s22, 1
      %p134 = por %p132, %p133
      %p136 = scmp.ne.s32.totalorder %s119, %s135
      %p137 = scmp.eq.s32.totalorder %s22, 0
      %p138 = por %p136, %p137
      %p139 = scmp.le.s32.totalorder 1, %s16
      %p140 = scmp.lt.s32.totalorder %s16, 3
      %p141 = pnand %p139, %p140
      %p142 = pneg %p141
      // Predicated region
      $region9: #{tpu_custom_call.1} parent=5 // pred_check
        _
      $region10: #{tpu_custom_call.1} parent=5 // pred_check_branch
        %144 = sbr.rel (%p141) target = $region12
      $region11: #{tpu_custom_call.1} parent=5 // pred_region
        %s145 = ssub.s32 %s16, 1
        // Predicated region
        $region13: #{tpu_custom_call.1} parent=11 // pred_check
          %p146 = pneg %p63
        $region14: #{tpu_custom_call.1} parent=11 // pred_check_branch
          %148 = sbr.rel (%p146) target = $region16
        $region15: #{tpu_custom_call.1} parent=11 // pred_region
          _
        $region16: #{tpu_custom_call.1} parent=11 // pred_fallthru
          _
        // Predicated region
        $region17: #{tpu_custom_call.1} parent=11 // pred_check
          %p149 = pneg %p84
        $region18: #{tpu_custom_call.1} parent=11 // pred_check_branch
          %151 = sbr.rel (%p149) target = $region20
        $region19: #{tpu_custom_call.1} parent=11 // pred_region
          _
        $region20: #{tpu_custom_call.1} parent=11 // pred_fallthru
          _
        // Predicated region
        $region21: #{tpu_custom_call.1} parent=11 // pred_check
          %p152 = pneg %p105
        $region22: #{tpu_custom_call.1} parent=11 // pred_check_branch
          %154 = sbr.rel (%p152) target = $region24
        $region23: #{tpu_custom_call.1} parent=11 // pred_region
          _
        $region24: #{tpu_custom_call.1} parent=11 // pred_fallthru
          _
      $region12: #{tpu_custom_call.1} parent=5 // pred_fallthru
        _
      %p155 = scmp.lt.s32.totalorder %s16, 2
      // Predicated region
      $region25: #{tpu_custom_call.1} parent=5 // pred_check
        %p156 = pneg %p155
      $region26: #{tpu_custom_call.1} parent=5 // pred_check_branch
        %158 = sbr.rel (%p156) target = $region28
      $region27: #{tpu_custom_call.1} parent=5 // pred_region
        // Predicated region
        $region29: #{tpu_custom_call.1} parent=27 // pred_check
          %p159 = pneg %p36
        $region30: #{tpu_custom_call.1} parent=27 // pred_check_branch
          %161 = sbr.rel (%p159) target = $region32
        $region31: #{tpu_custom_call.1} parent=27 // pred_region
          %s162 = sand.u32 %s26, 1
          %s163 = scalar_lea.sflag [#allocation3], %s162
          %s164 = sand.u32 %s26, 1
          %s165 = smul.addr %s164, 16
          %s166 = scalar_lea.vmem [#allocation2], %s165
          %168 = vsyncadd %s163, 0
          %s169 = smul.addr %s16, 2
          %s170 = smul.addr %s169, 8
          %s171 = scalar_lea.hbm %s0, %s170
          %s173 = sshll.u32 %s171, 4
          %s174 = int_to_ptr.hbm [resolvable:$true] %s173
          %s175 = sshll.u32 %s166, 4
          %s176 = int_to_ptr.vmem [resolvable:$true] %s175
          %178 = dma.hbm_to_vmem [thread:$0]  %s174, 256, %s176, %s163
        $region32: #{tpu_custom_call.1} parent=27 // pred_fallthru
          _
      $region28: #{tpu_custom_call.1} parent=5 // pred_fallthru
        _
      %p179 = scmp.le.s32.totalorder 1, %s16
      %p180 = scmp.lt.s32.totalorder %s16, 3
      %p181 = pnand %p179, %p180
      %p182 = pneg %p181
      // Predicated region
      $region33: #{tpu_custom_call.1} parent=5 // pred_check
        _
      $region34: #{tpu_custom_call.1} parent=5 // pred_check_branch
        %184 = sbr.rel (%p181) target = $region36
      $region35: #{tpu_custom_call.1} parent=5 // pred_region
        %s185 = ssub.s32 %s16, 1
        %s186 = sand.u32 %s29, 1
        %s187 = scalar_lea.sflag [#allocation3], %s186
        %s188 = sand.u32 %s29, 1
        %s189 = smul.addr %s188, 16
        %s190 = scalar_lea.vmem [#allocation2], %s189
        // Predicated region
        $region37: #{tpu_custom_call.1} parent=35 // pred_check
          %p191 = pneg %p42
        $region38: #{tpu_custom_call.1} parent=35 // pred_check_branch
          %193 = sbr.rel (%p191) target = $region40
        $region39: #{tpu_custom_call.1} parent=35 // pred_region
          %195 = dma.done %s187, 256
        $region40: #{tpu_custom_call.1} parent=35 // pred_fallthru
          _
        %s196 = sand.u32 %s29, 1
        %s197 = scalar_lea.sflag [#allocation3], %s196
        %s198 = sand.u32 %s29, 1
        %s199 = smul.addr %s198, 16
        %s200 = scalar_lea.vmem [#allocation2], %s199
        %p201 = pneg %p42
        %p202 = pneg %p39
        %p203 = pneg %p63
        %p204 = pneg %p60
        %p205 = pneg %p84
        %p206 = pneg %p81
        %p207 = pneg %p105
        %p208 = pneg %p102
        %p209 = pneg %p131
        %p210 = pneg %p128
        %s211 = sand.u32 %s118, 1
        %s212 = scalar_lea.sflag [#allocation4], %s211
        %s213 = sand.u32 %s118, 1
        %s214 = smul.addr %s213, 32
        %s215 = scalar_lea.vmem [#allocation5], %s214
        %v217 = vld [vmem:[%s190] sm:$0xff]
        %v218 = vld [vmem:[%s190 + $0x8] sm:$0xff]
        %v219 = vld [vmem:[%s1] sm:$0xff]
        %221 = vset.pattern.permute.xlu0 0
        %222 = vperm.xlu0 %221, %v219
        %v223 = vpop.permute.xlu0 %222
        %v225 = vmul.f32 %v217, %v223
        %v226 = vmul.f32 %v218, %v223
        %v227 = vld [vmem:[%s2] sm:$0xff]
        %229 = vset.pattern.permute.xlu0 0
        %230 = vperm.xlu0 %229, %v227
        %v231 = vpop.permute.xlu0 %230
        %v233 = vadd.f32 %v225, %v231
        %v234 = vadd.f32 %v226, %v231
        %v235 = vmax.f32 %v233, 0.0
        %v236 = vmax.f32 %v234, 0.0
        %239 = vrot.lane.b32.xlu0 %v235, 17
        %v240 = vpop.permute.xlu0 %239
        %241 = vrot.lane.b32.xlu0 %v236, 17
        %v242 = vpop.permute.xlu0 %241
        %vm243 = vcmask 138240
        %v244 = vsel %vm243, %v240, %v242
        %v248 = vsel %vm243, 0.0, %v240
        %v249 = vsel %vm243, %v242, 0.0
        %v250 = vlaneseq
        %v251 = vand.u32 %v250, 127
        %v252 = vadd.s32 %v251, 128
        %vm253 = vcmp.lt.s32.totalorder %v251, 0
        %v254 = vsub.s32 0, %v251
        %v255 = vsel %vm253, %v254, %v251
        %v256 = vshrl.u32 %v255, 4
        %v257 = vand.u32 %v255, 15
        %v258 = vsub.s32 0, %v257
        %v259 = vsel %vm253, %v258, %v257
        %vm260 = vcmp.lt.s32.totalorder %v252, 0
        %v261 = vsub.s32 0, %v252
        %v262 = vsel %vm260, %v261, %v252
        %v263 = vshrl.u32 %v262, 4
        %v264 = vand.u32 %v262, 15
        %v265 = vsub.s32 0, %v264
        %v266 = vsel %vm260, %v265, %v264
        %vm267 = vcmp.ne.s32.totalorder %v259, 0
        %vm268 = vcmp.ne.s32.totalorder %v266, 0
        %vm269 = vcmp.lt.s32.totalorder %v259, 0
        %vm270 = vcmp.lt.s32.totalorder %v266, 0
        %vm271 = vmand %vm269, %vm267
        %vm272 = vmand %vm270, %vm268
        %v273 = vadd.s32 %v259, 16
        %v274 = vadd.s32 %v266, 16
        %v275 = vsel %vm271, %v273, %v259
        %v276 = vsel %vm272, %v274, %v266
        %v277 = vadd.s32 %v275, 4294967295
        %v278 = vadd.s32 %v276, 4294967295
        %vm279 = vcmp.ge.s32.totalorder %v277, 0
        %vm280 = vcmp.ge.s32.totalorder %v278, 0
        %vm281 = vcmp.lt.s32.totalorder %v277, 16
        %vm282 = vcmp.lt.s32.totalorder %v278, 16
        %vm283 = vmand %vm279, %vm281
        %vm284 = vmand %vm280, %vm282
        %v285 = vsel %vm283, %v248, 0.0
        %v286 = vsel %vm284, %v244, 0.0
        %v287 = vadd.s32 %v275, 1
        %v288 = vadd.s32 %v276, 1
        %vm289 = vcmp.ge.s32.totalorder %v287, 0
        %vm290 = vcmp.ge.s32.totalorder %v288, 0
        %vm291 = vcmp.lt.s32.totalorder %v287, 16
        %vm292 = vcmp.lt.s32.totalorder %v288, 16
        %vm293 = vmand %vm289, %vm291
        %vm294 = vmand %vm290, %vm292
        %297 = vrot.lane.b32.xlu0 %v248, 126
        %v298 = vpop.permute.xlu0 %297
        %299 = vrot.lane.b32.xlu0 %v244, 126
        %v300 = vpop.permute.xlu0 %299
        %301 = vrot.lane.b32.xlu0 %v249, 126
        %v302 = vpop.permute.xlu0 %301
        %vm303 = vcmask 1031168
        %v304 = vsel %vm303, %v298, %v300
        %v305 = vsel %vm303, %v300, %v302
        %v308 = vsel %vm293, %v304, 0.0
        %v309 = vsel %vm294, %v305, 0.0
        %310 = vrot.lane.b32.xlu0 %v248, 112
        %v311 = vpop.permute.xlu0 %310
        %312 = vrot.lane.b32.xlu0 %v244, 112
        %v313 = vpop.permute.xlu0 %312
        %314 = vrot.lane.b32.xlu0 %v249, 112
        %v315 = vpop.permute.xlu0 %314
        %vm316 = vcmask 916480
        %v317 = vsel %vm316, %v311, %v313
        %v318 = vsel %vm316, %v313, %v315
        %v321 = vsel %vm283, %v317, 0.0
        %v322 = vsel %vm284, %v318, 0.0
        %323 = vrot.lane.b32.xlu0 %v248, 110
        %v324 = vpop.permute.xlu0 %323
        %325 = vrot.lane.b32.xlu0 %v244, 110
        %v326 = vpop.permute.xlu0 %325
        %327 = vrot.lane.b32.xlu0 %v249, 110
        %v328 = vpop.permute.xlu0 %327
        %vm329 = vcmask 900096
        %v330 = vsel %vm329, %v324, %v326
        %v331 = vsel %vm329, %v326, %v328
        %v334 = vsel %vm293, %v330, 0.0
        %v335 = vsel %vm294, %v331, 0.0
        %336 = vrot.lane.b32.xlu0 %v248, 96
        %v337 = vpop.permute.xlu0 %336
        %338 = vrot.lane.b32.xlu0 %v244, 96
        %v339 = vpop.permute.xlu0 %338
        %340 = vrot.lane.b32.xlu0 %v249, 96
        %v341 = vpop.permute.xlu0 %340
        %vm342 = vcmask 785408
        %v343 = vsel %vm342, %v337, %v339
        %v344 = vsel %vm342, %v339, %v341
        %v347 = vsel %vm283, %v343, 0.0
        %v348 = vsel %vm284, %v344, 0.0
        %349 = vrot.lane.b32.xlu0 %v248, 94
        %v350 = vpop.permute.xlu0 %349
        %351 = vrot.lane.b32.xlu0 %v244, 94
        %v352 = vpop.permute.xlu0 %351
        %353 = vrot.lane.b32.xlu0 %v249, 94
        %v354 = vpop.permute.xlu0 %353
        %vm355 = vcmask 769024
        %v356 = vsel %vm355, %v350, %v352
        %v357 = vsel %vm355, %v352, %v354
        %v360 = vsel %vm293, %v356, 0.0
        %v361 = vsel %vm294, %v357, 0.0
        %362 = vrot.lane.b32.xlu0 %v248, 127
        %v363 = vpop.permute.xlu0 %362
        %364 = vrot.lane.b32.xlu0 %v244, 127
        %v365 = vpop.permute.xlu0 %364
        %366 = vrot.lane.b32.xlu0 %v249, 127
        %v367 = vpop.permute.xlu0 %366
        %vm368 = vcmask 1039360
        %v369 = vsel %vm368, %v363, %v365
        %v370 = vsel %vm368, %v365, %v367
        %373 = vrot.lane.b32.xlu0 %v248, 111
        %v374 = vpop.permute.xlu0 %373
        %375 = vrot.lane.b32.xlu0 %v244, 111
        %v376 = vpop.permute.xlu0 %375
        %377 = vrot.lane.b32.xlu0 %v249, 111
        %v378 = vpop.permute.xlu0 %377
        %vm379 = vcmask 908288
        %v380 = vsel %vm379, %v374, %v376
        %v381 = vsel %vm379, %v376, %v378
        %384 = vrot.lane.b32.xlu0 %v248, 95
        %v385 = vpop.permute.xlu0 %384
        %386 = vrot.lane.b32.xlu0 %v244, 95
        %v387 = vpop.permute.xlu0 %386
        %388 = vrot.lane.b32.xlu0 %v249, 95
        %v389 = vpop.permute.xlu0 %388
        %vm390 = vcmask 777216
        %v391 = vsel %vm390, %v385, %v387
        %v392 = vsel %vm390, %v387, %v389
        %v395 = vpack.c.bf16 %v369, %v285
        %v396 = vpack.c.bf16 %v370, %v286
        %v397 = vpack.c.bf16 %v321, %v308
        %v398 = vpack.c.bf16 %v322, %v309
        %v399 = vpack.c.bf16 %v334, %v380
        %v400 = vpack.c.bf16 %v335, %v381
        %v401 = vpack.c.bf16 %v391, %v347
        %v402 = vpack.c.bf16 %v392, %v348
        %v403 = vpack.c.bf16 %v360, %v360
        %v404 = vpack.c.bf16 %v361, %v361
        %v405 = vld [vmem:[%s3] sm:$0xf]
        %v406 = vld [vmem:[%s3 + $0x4] sm:$0xf]
        %v409 = vunpack.c.l.b16 %v405
        %v410 = vunpack.c.l.b16 %v406
        %v411 = vpack.c.b16 %v410, %v409
        %vm412 = vcmask 588800
        %v414 = vsel %vm412, %v411, 0
        %vm416 = vcmask 1043456
        %v418 = vsel %vm416, %v403, 0
        %v421 = vsel %vm416, %v404, 0
        %423 = vmatpush.bf16.msra.mxu0 0
        %424 = vmatpush.bf16.msra.mxu0 0
        %425 = vmatpush.bf16.msra.mxu0 0
        %426 = vmatpush.bf16.msra.mxu0 %v418
        %427 = vmatpush.bf16.msra.mxu0 %v401
        %428 = vmatpush.bf16.msra.mxu0 %v399
        %429 = vmatpush.bf16.msra.mxu0 %v397
        %430 = vmatpush.bf16.msra.mxu0 %v395
        %431 = vmatmul.bf16.gmra.mxu0 %v414
        %v432 = vpop.f32.mrf.mxu0
        %v433 = vadd.f32 0.0, %v432
        %v434 = vpop.f32.mrf.mxu0
        %v435 = vadd.f32 0.0, %v434
        %436 = vdwg.mxu0
        %437 = vmatpush.bf16.msra.mxu0 0
        %438 = vmatpush.bf16.msra.mxu0 0
        %439 = vmatpush.bf16.msra.mxu0 0
        %440 = vmatpush.bf16.msra.mxu0 %v421
        %441 = vmatpush.bf16.msra.mxu0 %v402
        %442 = vmatpush.bf16.msra.mxu0 %v400
        %443 = vmatpush.bf16.msra.mxu0 %v398
        %444 = vmatpush.bf16.msra.mxu0 %v396
        %445 = vmatmul.bf16.gmra.mxu0 %v414
        %v446 = vpop.f32.mrf.mxu0
        %v447 = vadd.f32 0.0, %v446
        %v448 = vpop.f32.mrf.mxu0
        %v449 = vadd.f32 0.0, %v448
        %450 = vdwg.mxu0
        %451 = vst [vmem:[%s215] sm:$0xff] %v433
        %452 = vst [vmem:[%s215 + $0x8] sm:$0xff] %v447
        %453 = vst [vmem:[%s215 + $0x10] sm:$0xff] %v435
        %454 = vst [vmem:[%s215 + $0x18] sm:$0xff] %v449
        %s455 = sand.u32 %s118, 1
        %s456 = scalar_lea.sflag [#allocation4], %s455
        %s457 = sand.u32 %s118, 1
        %s458 = smul.addr %s457, 32
        %s459 = scalar_lea.vmem [#allocation5], %s458
        // Predicated region
        $region41: #{tpu_custom_call.1} parent=35 // pred_check
          %p460 = pneg %p128
        $region42: #{tpu_custom_call.1} parent=35 // pred_check_branch
          %462 = sbr.rel (%p460) target = $region44
        $region43: #{tpu_custom_call.1} parent=35 // pred_region
          %464 = vsyncadd %s456, 0
          %s465 = smul.addr %s21, 4
          %s466 = smul.addr %s465, 8
          %s467 = scalar_lea.hbm %s4, %s466
          %s468 = sshll.u32 %s459, 4
          %s469 = int_to_ptr.vmem [resolvable:$true] %s468
          %s470 = sshll.u32 %s467, 4
          %s471 = int_to_ptr.hbm [resolvable:$true] %s470
          %476 = dma.vmem_to_hbm [thread:$0]  %s469, 512, %s471, %s456, 256, 256, 16
        $region44: #{tpu_custom_call.1} parent=35 // pred_fallthru
          _
      $region36: #{tpu_custom_call.1} parent=5 // pred_fallthru
        _
      %p477 = scmp.le.s32.totalorder 2, %s16
      // Predicated region
      $region45: #{tpu_custom_call.1} parent=5 // pred_check
        %p478 = pneg %p477
      $region46: #{tpu_custom_call.1} parent=5 // pred_check_branch
        %480 = sbr.rel (%p478) target = $region48
      $region47: #{tpu_custom_call.1} parent=5 // pred_region
        %s481 = ssub.s32 %s16, 2
        // Predicated region
        $region49: #{tpu_custom_call.1} parent=47 // pred_check
          %p482 = pneg %p134
        $region50: #{tpu_custom_call.1} parent=47 // pred_check_branch
          %484 = sbr.rel (%p482) target = $region52
        $region51: #{tpu_custom_call.1} parent=47 // pred_region
          %s485 = sand.u32 %s119, 1
          %s486 = scalar_lea.sflag [#allocation4], %s485
          %s487 = sand.u32 %s119, 1
          %s488 = smul.addr %s487, 32
          %s489 = scalar_lea.vmem [#allocation5], %s488
          %491 = dma.done %s486, 512
        $region52: #{tpu_custom_call.1} parent=47 // pred_fallthru
          _
      $region48: #{tpu_custom_call.1} parent=5 // pred_fallthru
        _
    $region6: #{tpu_custom_call.1} parent=1 // loop_footer
      %s20 = sadd.s32 1, %s16
    $region7: #{tpu_custom_call.1} parent=1 // loop_footer_branch
      %15 = sbr.rel target = $region3
    $region8: #{tpu_custom_call.1} parent=1 // loop_exit
      _
    %492 = vsyncpa [#allocation3], 1
    %s493 = scalar_lea.sflag [#allocation3], 1
    %494 = vsyncpa %s493, 1
    %495 = vsyncpa [#allocation4], 1
    %s496 = scalar_lea.sflag [#allocation4], 1
    %497 = vsyncpa %s496, 1

</llo_original>
